<compile_context>
chip_gen: v5e
topology: v5e:2x2
jax: 0.10.0
libtpu: 0.0.40
codegen_flags: <defaults>
</compile_context>

<pallas_src>
import functools

import jax
import jax.numpy as jnp
from jax.experimental import pallas as pl
from jax.experimental.pallas import tpu as pltpu


def _round_up(x, m):
    return (x + m - 1) // m * m


def _cdiv(a, b):
    return (a + b - 1) // b


def _pad2d(x, rows, cols):
    return jnp.pad(x, ((0, rows - x.shape[0]), (0, cols - x.shape[1])))


def _pick_tile(n, max_tile):
    """Tile size (multiple of 128, <= max_tile) for an axis of length n.

    Minimizes padded size with a mild per-grid-step penalty; prefers exact
    divisors of round_up(n, 128) so round-up padding waste is normally zero.
    Returns (tile, padded_extent) with padded_extent % tile == 0.
    """
    n_pad = _round_up(max(n, 1), 128)
    max_tile = max(128, min(_round_up(max_tile, 128), n_pad))
    best_t, best_score, best_pad = 128, None, n_pad
    for t in range(128, max_tile + 1, 128):
        padded = _round_up(n_pad, t)
        steps = padded // t
        score = padded + 64 * steps        # 64-row proxy for fixed step overhead
        if best_score is None or score < best_score:
            best_t, best_score, best_pad = t, score, padded
    return best_t, best_pad


def _divisor_tile(n, max_tile):
    """Largest multiple of 128 that divides n (itself a multiple of 128) and <= max_tile."""
    best, t = 128, 128
    lim = min(n, max_tile)
    while t <= lim:
        if n % t == 0:
            best = t
        t += 128
    return best


# --------------------------------------------------------------------------
# Projection kernel: XW[r] = X[r] @ W[r] + b[r]   (once per relation, big blocks)
# --------------------------------------------------------------------------
def _project_kernel(x_ref, w_ref, b_ref, xw_ref):
    # x_ref: (ps, IN) bf16   w_ref: (IN, OUTP) bf16   b_ref: (1, OUTP) f32
    xw = jnp.dot(x_ref[...], w_ref[...], preferred_element_type=jnp.float32)
    xw_ref[...] = (xw + b_ref[...]).astype(xw_ref.dtype)


def _project(x_stack, w_stack, b_stack, ps):
    R, s_pad, in_size = x_stack.shape
    outp = w_stack.shape[2]
    return pl.pallas_call(
        _project_kernel,
        out_shape=jax.ShapeDtypeStruct((R, s_pad, outp), jnp.bfloat16),
        grid=(R, s_pad // ps),
        in_specs=[
            pl.BlockSpec((None, ps, in_size), lambda r, s: (r, s, 0)),
            pl.BlockSpec((None, in_size, outp), lambda r, s: (r, 0, 0)),
            pl.BlockSpec((None, 1, outp), lambda r, s: (r, 0, 0)),
        ],
        out_specs=pl.BlockSpec((None, ps, outp), lambda r, s: (r, s, 0)),
        compiler_params=pltpu.CompilerParams(
            dimension_semantics=("parallel", "parallel")),
    )(x_stack, w_stack, b_stack)


# --------------------------------------------------------------------------
# Fused aggregation kernel over all relations of one dst type.
#     out  = 0                                   at (rel==0, src_tile==0)
#     out += A_T[rel, dst_tile, src_tile] @ XW[rel, src_tile]
#     out  = relu(out)        after each relation (torch loop order)
# Accumulates directly into the f32 output block (VMEM-resident across r,s).
# --------------------------------------------------------------------------
def _aggregate_kernel(aT_ref, xw_ref, o_ref, *, apply_relu):
    r = pl.program_id(1)
    s = pl.program_id(2)

    @pl.when((r == 0) & (s == 0))
    def _():
        o_ref[...] = jnp.zeros_like(o_ref)

    a_bf = aT_ref[...].astype(jnp.bfloat16)        # int8 {0,1} -> exact bf16
    o_ref[...] += jnp.dot(a_bf, xw_ref[...], preferred_element_type=jnp.float32)

    if apply_relu:
        @pl.when(s == pl.num_programs(2) - 1)
        def _():
            o_ref[...] = jnp.maximum(o_ref[...], 0.0)


def _aggregate(aT_stack, xw_stack, td, ts, apply_relu):
    R, n_dst_pad, s_pad = aT_stack.shape
    outp = xw_stack.shape[2]
    # VMEM footprint: double-buffered A (int8) + XW (bf16) tiles + output (f32).
    foot = (2 * (td * ts * aT_stack.dtype.itemsize
                 + ts * outp * xw_stack.dtype.itemsize)
            + 2 * td * outp * 4)
    vmem_limit = int(max(foot + (8 << 20), 16 << 20))
    kernel = functools.partial(_aggregate_kernel, apply_relu=apply_relu)
    return pl.pallas_call(
        kernel,
        out_shape=jax.ShapeDtypeStruct((n_dst_pad, outp), jnp.float32),
        grid=(n_dst_pad // td, R, s_pad // ts),
        in_specs=[
            pl.BlockSpec((None, td, ts), lambda j, r, s: (r, j, s)),
            pl.BlockSpec((None, ts, outp), lambda j, r, s: (r, s, 0)),
        ],
        out_specs=pl.BlockSpec((td, outp), lambda j, r, s: (j, 0)),
        compiler_params=pltpu.CompilerParams(
            dimension_semantics=("parallel", "arbitrary", "arbitrary"),
            vmem_limit_bytes=vmem_limit),
    )(aT_stack, xw_stack)


class HeteroRelationalGraphConvPallas:
    """JAX/Pallas port of HeteroRelationalGraphConv (dropout p=0.0 -> identity)."""

    def __init__(self, in_size, out_size, relation_names, activation=None,
                 key=None, dst_tile=1024, src_tile=2048):
        if activation not in (None, "relu"):
            raise ValueError("only activation=None or 'relu' is supported")
        if key is None:
            key = jax.random.PRNGKey(0)
        self.in_size = in_size
        self.out_size = out_size
        self.outp = _round_up(out_size, 128)      # lane-dense padded out dim
        self.relation_names = list(relation_names)
        self.activation = activation
        self.dst_tile = _round_up(dst_tile, 128)
        self.src_tile = _round_up(src_tile, 128)

        self.params = {}     # f32 originals (for the pure-JAX reference)
        self._wb = {}        # pre-padded bf16 W / f32 b, built once
        for rel in self.relation_names:
            key, kw, kb = jax.random.split(key, 3)
            bound = 1.0 / float(jnp.sqrt(in_size))
            W = jax.random.uniform(kw, (in_size, out_size), jnp.float32,
                                   -bound, bound)
            b = jax.random.uniform(kb, (1, out_size), jnp.float32,
                                   -bound, bound)
            self.params[str(rel)] = (W, b)
            self._wb[str(rel)] = (
                _pad2d(W.astype(jnp.bfloat16), in_size, self.outp),
                _pad2d(b, 1, self.outp),
            )
        self._adj_cache = {}

    # Preprocess (and cache) the adjacency layout: grouped by dst type,
    # transposed, int8, padded and stacked once per distinct graph.
    def _prepare(self, A):
        cache_key = (id(A), tuple((rel, tuple(A[rel].shape)) for rel in A))
        prep = self._adj_cache.get(cache_key)
        if prep is not None:
            return prep

        groups = {}
        for rel in A:                       # dict order == torch loop order
            groups.setdefault(rel[2], []).append(rel)

        prep = {}
        for dst_type, rels in groups.items():
            n_dst = A[rels[0]].shape[1]
            max_src = max(A[rel].shape[0] for rel in rels)

            n_dst_128 = _round_up(n_dst, 128)
            dst_cap = self.dst_tile
            if n_dst_128 >= 256:
                # keep >= 2 dst tiles so v7x megacore can use both TensorCores
                dst_cap = min(dst_cap, _round_up(_cdiv(n_dst_128, 2), 128))
            td, n_dst_pad = _pick_tile(n_dst, dst_cap)
            ts, s_pad = _pick_tile(max_src, self.src_tile)
            ps = _divisor_tile(s_pad, 8192)          # big projection blocks

            aT_list, w_list, b_list, src_types = [], [], [], []
            for rel in rels:
                src_type, edge_type, _ = rel
                # Cast to int8 BEFORE transpose/pad: 0/1 is exact and this
                # quarters the bytes moved by the (cached) preprocessing and
                # by the aggregation kernel's dominant A stream.
                a_t = A[rel].astype(jnp.int8).T            # [n_dst, n_src]
                aT_list.append(_pad2d(a_t, n_dst_pad, s_pad))
                W_bf, b_f32 = self._wb[str(edge_type)]
                w_list.append(W_bf)
                b_list.append(b_f32)
                src_types.append(src_type)

            prep[dst_type] = dict(
                src_types=src_types,
                aT_stack=jnp.stack(aT_list),     # (R, n_dst_pad, s_pad) int8
                w_stack=jnp.stack(w_list),       # (R, in, outp)         bf16
                b_stack=jnp.stack(b_list),       # (R, 1, outp)          f32
                n_dst=n_dst, td=td, ts=ts, ps=ps, s_pad=s_pad)
        self._adj_cache[cache_key] = prep
        return prep

    def __call__(self, A, inputs):
        apply_relu = self.activation == "relu"
        prep = self._prepare(A)
        hs = {}
        for dst_type, g in prep.items():
            # Padded X rows project to exactly b (bias on zero rows); they
            # contribute nothing because the matching A_T columns are zero.
            x_list = [
                _pad2d(inputs[st].astype(jnp.bfloat16), g["s_pad"], self.in_size)
                for st in g["src_types"]
            ]
            x_stack = jnp.stack(x_list)          # (R, s_pad, in) bf16
            xw = _project(x_stack, g["w_stack"], g["b_stack"], g["ps"])
            h = _aggregate(g["aT_stack"], xw, g["td"], g["ts"], apply_relu)
            hs[dst_type] = h[:g["n_dst"], :self.out_size]
        return hs


def _ref_forward(module, A, inputs):
    """Pure-JAX reference mirroring the PyTorch loop, on the same bf16 path."""
    hs = {}
    for rel in A:
        src_type, edge_type, dst_type = rel
        if dst_type not in hs:
            hs[dst_type] = jnp.zeros(
                (inputs[dst_type].shape[0], module.out_size), jnp.float32)
        W, b = module.params[str(edge_type)]
        x_bf = inputs[src_type].astype(jnp.bfloat16)
        w_bf = W.astype(jnp.bfloat16)
        xw = jnp.dot(x_bf, w_bf, preferred_element_type=jnp.float32) + b
        xw_bf = xw.astype(jnp.bfloat16)
        a_bf = A[rel].astype(jnp.bfloat16)
        hs[dst_type] = hs[dst_type] + jnp.dot(
            a_bf.T, xw_bf, preferred_element_type=jnp.float32)
        if module.activation is not None:
            hs[dst_type] = jnp.maximum(hs[dst_type], 0.0)
    return hs


if __name__ == "__main__":
    key = jax.random.PRNGKey(0)
    in_size, out_size = 32, 64
    n_user, n_item = 256, 128

    relation_names = ["follows", "buys", "bought_by"]
    module = HeteroRelationalGraphConvPallas(
        in_size, out_size, relation_names, activation="relu",
        key=jax.random.PRNGKey(0))

    k1, k2, k3, k4, k5 = jax.random.split(key, 5)
    inputs = {
        "user": jax.random.normal(k1, (n_user, in_size), jnp.float32),
        "item": jax.random.normal(k2, (n_item, in_size), jnp.float32),
    }
    # A[rel] is [N_src, N_dst]; 0/1 adjacency (exact in int8/bf16).
    A = {
        ("user", "follows", "user"):
            (jax.random.uniform(k3, (n_user, n_user)) < 0.1).astype(jnp.float32),
        ("user", "buys", "item"):
            (jax.random.uniform(k4, (n_user, n_item)) < 0.1).astype(jnp.float32),
        ("item", "bought_by", "user"):
            (jax.random.uniform(k5, (n_item, n_user)) < 0.1).astype(jnp.float32),
    }

    out = module(A, inputs)
    out = jax.tree_util.tree_map(jax.block_until_ready, out)
    # Second call exercises the cached adjacency path.
    out = module(A, inputs)
    out = jax.tree_util.tree_map(jax.block_until_ready, out)

    ref = _ref_forward(module, A, inputs)
    for k in ref:
        assert out[k].shape == ref[k].shape, (k, out[k].shape, ref[k].shape)
        assert jnp.allclose(out[k], ref[k], rtol=1e-3, atol=1e-3), \
            f"mismatch for dst type {k}"

    print("KERNEL_OK")
</pallas_src>

<mosaic_0001>
module attributes {stable_mosaic.version = 11 : i64} {
  func.func @_project_kernel(%arg0: i32, %arg1: i32, %arg2: memref<1x256x32xbf16, #tpu.memory_space<vmem>>, %arg3: memref<1x32x128xbf16, #tpu.memory_space<vmem>>, %arg4: memref<1x1x128xf32, #tpu.memory_space<vmem>>, %arg5: memref<1x256x128xbf16, #tpu.memory_space<vmem>>) attributes {dimension_semantics = [#tpu.dimension_semantics<parallel>, #tpu.dimension_semantics<parallel>], iteration_bounds = array<i64: 2, 1>, scalar_prefetch = 0 : i64, scratch_operands = 0 : i64, tpu.core_type = #tpu.core_type<tc>, window_params = [{transform_indices = @transform_0, window_bounds = array<i64: 1, 256, 32>}, {transform_indices = @transform_1, window_bounds = array<i64: 1, 32, 128>}, {transform_indices = @transform_2, window_bounds = array<i64: 1, 1, 128>}, {transform_indices = @transform_3, window_bounds = array<i64: 1, 256, 128>}]} {
    %c0 = arith.constant 0 : index
    %c0_0 = arith.constant 0 : index
    %c0_1 = arith.constant 0 : index
    %0 = vector.load %arg2[%c0, %c0_0, %c0_1] : memref<1x256x32xbf16, #tpu.memory_space<vmem>>, vector<1x256x32xbf16>
    %1 = vector.shape_cast %0 : vector<1x256x32xbf16> to vector<256x32xbf16>
    %c0_2 = arith.constant 0 : index
    %c0_3 = arith.constant 0 : index
    %c0_4 = arith.constant 0 : index
    %2 = vector.load %arg3[%c0_2, %c0_3, %c0_4] : memref<1x32x128xbf16, #tpu.memory_space<vmem>>, vector<1x32x128xbf16>
    %3 = vector.shape_cast %2 : vector<1x32x128xbf16> to vector<32x128xbf16>
    %cst = arith.constant dense<0.000000e+00> : vector<256x128xf32>
    %4 = tpu.matmul %1, %3, %cst {dimension_numbers = #tpu.dot_dimension_numbers<[1], [0], [0], [1], [0, 0, 1, 1], [], []>} : vector<256x32xbf16>, vector<32x128xbf16>, vector<256x128xf32> -> vector<256x128xf32>
    %c0_5 = arith.constant 0 : index
    %c0_6 = arith.constant 0 : index
    %c0_7 = arith.constant 0 : index
    %5 = vector.load %arg4[%c0_5, %c0_6, %c0_7] : memref<1x1x128xf32, #tpu.memory_space<vmem>>, vector<1x1x128xf32>
    %6 = vector.shape_cast %5 : vector<1x1x128xf32> to vector<1x128xf32>
    %7 = vector.broadcast %6 : vector<1x128xf32> to vector<256x128xf32>
    %8 = arith.addf %4, %7 : vector<256x128xf32>
    %9 = arith.truncf %8 : vector<256x128xf32> to vector<256x128xbf16>
    %c0_8 = arith.constant 0 : index
    %c0_9 = arith.constant 0 : index
    %c0_10 = arith.constant 0 : index
    %10 = vector.load %arg5[%c0_8, %c0_9, %c0_10] : memref<1x256x128xbf16, #tpu.memory_space<vmem>>, vector<1x256x128xbf16>
    %11 = vector.shape_cast %10 : vector<1x256x128xbf16> to vector<256x128xbf16>
    %12 = vector.shape_cast %9 : vector<256x128xbf16> to vector<1x256x128xbf16>
    tpu.vector_store %arg5[%c0_8, %c0_9, %c0_10], %12 {strides = array<i32>} : memref<1x256x128xbf16, #tpu.memory_space<vmem>>, vector<1x256x128xbf16>,
    return
  }
  func.func @transform_0(%arg0: i32, %arg1: i32) -> (i32, i32, i32) {
    %c0_i32 = arith.constant 0 : i32
    %c0_i32_0 = arith.constant 0 : i32
    return %arg0, %arg1, %c0_i32 : i32, i32, i32
  }
  func.func @transform_1(%arg0: i32, %arg1: i32) -> (i32, i32, i32) {
    %c0_i32 = arith.constant 0 : i32
    %c0_i32_0 = arith.constant 0 : i32
    %c0_i32_1 = arith.constant 0 : i32
    return %arg0, %c0_i32, %c0_i32_0 : i32, i32, i32
  }
  func.func @transform_2(%arg0: i32, %arg1: i32) -> (i32, i32, i32) {
    %c0_i32 = arith.constant 0 : i32
    %c0_i32_0 = arith.constant 0 : i32
    %c0_i32_1 = arith.constant 0 : i32
    return %arg0, %c0_i32, %c0_i32_0 : i32, i32, i32
  }
  func.func @transform_3(%arg0: i32, %arg1: i32) -> (i32, i32, i32) {
    %c0_i32 = arith.constant 0 : i32
    %c0_i32_0 = arith.constant 0 : i32
    return %arg0, %arg1, %c0_i32 : i32, i32, i32
  }
}

</mosaic_0001>

<llo_original>
// kernel: tpu_custom_call.1
$region0: #{tpu_custom_call.1}
  #allocation0 [shape = 'u32[]', space=smem, size = 0x4, offset = 0x4, fixed_abs, tag = 'smem constant byte address 0x4 - core index']
  #allocation1 [shape = 'u32[72,128]{1,0:T(1,128)}', space=vmem, size = 0x9000, scoped, tag = 'internal scratch']
  %s0 = inlined_call_operand.vmem [shape: bf16[2,256,32], index: 0, kind: input, shape index: {}]
  %s1 = inlined_call_operand.vmem [shape: bf16[2,32,128], index: 1, kind: input, shape index: {}]
  %s2 = inlined_call_operand.vmem [shape: f32[2,1,128], index: 2, kind: input, shape index: {}]
  %s3 = inlined_call_operand.hbm [shape: bf16[2,256,128], index: 3, kind: output, shape index: {}]
  %s4 = sld [smem:[#allocation0]]
  $region45: #{tpu_custom_call.1} parent=0
    _
  %s6 = ssub.s32 1, %s4
  %s7 = scalar_select 0, %s6, %s4
  $region1: #{tpu_custom_call.1} parent=0
    #allocation2 [shape = 'u8[131072]{0}', space=vmem, size = 0x20000, scoped, tag = 'output window, operand 0']
    #allocation3 [shape = 's32[2]{0}', space=sflag, size = 0x8, scoped, tag = 'scoped memory for tpu_custom_call.1']
    %8 = vsyncpa [#allocation3], 0
    %s9 = scalar_lea.sflag [#allocation3], 1
    %10 = vsyncpa %s9, 0
    loop: start=0, step=1, limit=4
    $region2: #{tpu_custom_call.1} parent=1 // loop_pre_header
      _
    $region3: #{tpu_custom_call.1} parent=1 // loop_header
      %s12 = sphi 0, %s16
      %p13 = scmp.ge.s32.totalorder %s12, 4
      %s19 = sphi 0, %s31
      %s20 = sphi 0, %s27
      %s21 = sphi 0, %s19
      %s22 = sphi 0, %s20
      %s23 = sphi 0, %s21
      %s24 = sphi 0, %s22
      %s36 = sphi 0, %s38
      %s39 = sphi 0, %s36
      %s40 = sphi 0, %s39
      %s56 = sphi 0, %s40
      %s62 = sphi 0, %s64
      %s65 = sphi 0, %s62
      %s66 = sphi 0, %s65
      %s82 = sphi 0, %s66
      %s88 = sphi 0, %s90
      %s91 = sphi 0, %s88
      %s92 = sphi 0, %s91
      %s108 = sphi 0, %s92
      %s116 = sphi 0, %s118
      %s119 = sphi 0, %s116
      %s120 = sphi 0, %s119
      %s136 = sphi 0, %s120
    $region4: #{tpu_custom_call.1} parent=1 // loop_header_branch
      %15 = sbr.rel (%p13) target = $region8
    $region5: #{tpu_custom_call.1} parent=1 // loop_body
      %s17 = ssub.s32 %s12, 1
      %s18 = ssub.s32 %s12, 2
      %s25 = sadd.s32 1, %s20
      %p26 = scmp.ge.s32.totalorder %s25, 1
      %s27 = scalar_select %p26, 0, %s25
      %s28 = sadd.s32 1, %s19
      %s29 = scalar_select %p26, %s28, %s19
      %p30 = scmp.ge.s32.totalorder %s29, 2
      %s31 = scalar_select %p30, 0, %s29
      %s32 = ssub.s32 %s19, %s31
      %s33 = ssub.s32 %s20, %s27
      %s34 = sor.u32 %s32, %s33
      %p35 = scmp.eq.s32.totalorder %s34, 0
      %s37 = sadd.s32 %s36, 1
      %s38 = scalar_select %p35, %s36, %s37
      %p41 = pneg %p35
      %p42 = scmp.eq.s32.totalorder %s12, 1
      %p43 = por %p41, %p42
      %p44 = scmp.ne.s32.totalorder %s36, %s39
      %p45 = scmp.eq.s32.totalorder %s12, 0
      %p46 = por %p44, %p45
      %p47 = scmp.ne.s32.totalorder %s36, %s39
      %p48 = scmp.eq.s32.totalorder %s17, 1
      %p49 = por %p47, %p48
      %p50 = scmp.ne.s32.totalorder %s39, %s40
      %p51 = scmp.eq.s32.totalorder %s17, 0
      %p52 = por %p50, %p51
      %p53 = scmp.ne.s32.totalorder %s39, %s40
      %p54 = scmp.eq.s32.totalorder %s18, 1
      %p55 = por %p53, %p54
      %p57 = scmp.ne.s32.totalorder %s40, %s56
      %p58 = scmp.eq.s32.totalorder %s18, 0
      %p59 = por %p57, %p58
      %s60 = ssub.s32 %s19, %s31
      %p61 = scmp.eq.s32.totalorder %s60, 0
      %s63 = sadd.s32 %s62, 1
      %s64 = scalar_select %p61, %s62, %s63
      %p67 = pneg %p61
      %p68 = scmp.eq.s32.totalorder %s12, 1
      %p69 = por %p67, %p68
      %p70 = scmp.ne.s32.totalorder %s62, %s65
      %p71 = scmp.eq.s32.totalorder %s12, 0
      %p72 = por %p70, %p71
      %p73 = scmp.ne.s32.totalorder %s62, %s65
      %p74 = scmp.eq.s32.totalorder %s17, 1
      %p75 = por %p73, %p74
      %p76 = scmp.ne.s32.totalorder %s65, %s66
      %p77 = scmp.eq.s32.totalorder %s17, 0
      %p78 = por %p76, %p77
      %p79 = scmp.ne.s32.totalorder %s65, %s66
      %p80 = scmp.eq.s32.totalorder %s18, 1
      %p81 = por %p79, %p80
      %p83 = scmp.ne.s32.totalorder %s66, %s82
      %p84 = scmp.eq.s32.totalorder %s18, 0
      %p85 = por %p83, %p84
      %s86 = ssub.s32 %s19, %s31
      %p87 = scmp.eq.s32.totalorder %s86, 0
      %s89 = sadd.s32 %s88, 1
      %s90 = scalar_select %p87, %s88, %s89
      %p93 = pneg %p87
      %p94 = scmp.eq.s32.totalorder %s12, 1
      %p95 = por %p93, %p94
      %p96 = scmp.ne.s32.totalorder %s88, %s91
      %p97 = scmp.eq.s32.totalorder %s12, 0
      %p98 = por %p96, %p97
      %p99 = scmp.ne.s32.totalorder %s88, %s91
      %p100 = scmp.eq.s32.totalorder %s17, 1
      %p101 = por %p99, %p100
      %p102 = scmp.ne.s32.totalorder %s91, %s92
      %p103 = scmp.eq.s32.totalorder %s17, 0
      %p104 = por %p102, %p103
      %p105 = scmp.ne.s32.totalorder %s91, %s92
      %p106 = scmp.eq.s32.totalorder %s18, 1
      %p107 = por %p105, %p106
      %p109 = scmp.ne.s32.totalorder %s92, %s108
      %p110 = scmp.eq.s32.totalorder %s18, 0
      %p111 = por %p109, %p110
      %s112 = ssub.s32 %s19, %s31
      %s113 = ssub.s32 %s20, %s27
      %s114 = sor.u32 %s112, %s113
      %p115 = scmp.eq.s32.totalorder %s114, 0
      %s117 = sadd.s32 %s116, 1
      %s118 = scalar_select %p115, %s116, %s117
      %p121 = pneg %p115
      %p122 = scmp.eq.s32.totalorder %s12, 1
      %p123 = por %p121, %p122
      %p124 = scmp.ne.s32.totalorder %s116, %s119
      %p125 = scmp.eq.s32.totalorder %s12, 0
      %p126 = por %p124, %p125
      %p127 = scmp.ne.s32.totalorder %s116, %s119
      %p128 = scmp.eq.s32.totalorder %s17, 1
      %p129 = por %p127, %p128
      %p130 = scmp.ne.s32.totalorder %s119, %s120
      %p131 = scmp.eq.s32.totalorder %s17, 0
      %p132 = por %p130, %p131
      %p133 = scmp.ne.s32.totalorder %s119, %s120
      %p134 = scmp.eq.s32.totalorder %s18, 1
      %p135 = por %p133, %p134
      %p137 = scmp.ne.s32.totalorder %s120, %s136
      %p138 = scmp.eq.s32.totalorder %s18, 0
      %p139 = por %p137, %p138
      %p140 = scmp.le.s32.totalorder 1, %s12
      %p141 = scmp.lt.s32.totalorder %s12, 3
      %p142 = pnand %p140, %p141
      %p143 = pneg %p142
      // Predicated region
      $region9: #{tpu_custom_call.1} parent=5 // pred_check
        _
      $region10: #{tpu_custom_call.1} parent=5 // pred_check_branch
        %145 = sbr.rel (%p142) target = $region12
      $region11: #{tpu_custom_call.1} parent=5 // pred_region
        %s146 = ssub.s32 %s12, 1
      $region12: #{tpu_custom_call.1} parent=5 // pred_fallthru
        _
      %p147 = scmp.lt.s32.totalorder %s12, 2
      // Predicated region
      $region13: #{tpu_custom_call.1} parent=5 // pred_check
        %p148 = pneg %p147
      $region14: #{tpu_custom_call.1} parent=5 // pred_check_branch
        %150 = sbr.rel (%p148) target = $region16
      $region15: #{tpu_custom_call.1} parent=5 // pred_region
        // Predicated region
        $region17: #{tpu_custom_call.1} parent=15 // pred_check
          %p151 = pneg %p46
        $region18: #{tpu_custom_call.1} parent=15 // pred_check_branch
          %153 = sbr.rel (%p151) target = $region20
        $region19: #{tpu_custom_call.1} parent=15 // pred_region
          %s154 = smul.u32 32, %s20
          %p155 = scmp.lt.s32.totalorder %s19, 1
          %s156 = scalar_select %p155, %s19, 1
          %p157 = scmp.lt.s32.totalorder %s154, 31
          %s158 = scalar_select %p157, %s154, 31
          %s159 = smul.addr %s156, 32
          %s160 = sadd.s32 %s158, %s159
          %s161 = smul.addr %s160, 4
          %s162 = scalar_lea.vmem %s0, %s161
          %s163 = smul.u32 32, %s20
        $region20: #{tpu_custom_call.1} parent=15 // pred_fallthru
          _
        // Predicated region
        $region21: #{tpu_custom_call.1} parent=15 // pred_check
          %p164 = pneg %p72
        $region22: #{tpu_custom_call.1} parent=15 // pred_check_branch
          %166 = sbr.rel (%p164) target = $region24
        $region23: #{tpu_custom_call.1} parent=15 // pred_region
          %p167 = scmp.lt.s32.totalorder %s19, 1
          %s168 = scalar_select %p167, %s19, 1
          %s169 = smul.addr %s168, 4
          %s170 = smul.addr %s169, 4
          %s171 = scalar_lea.vmem %s1, %s170
        $region24: #{tpu_custom_call.1} parent=15 // pred_fallthru
          _
        // Predicated region
        $region25: #{tpu_custom_call.1} parent=15 // pred_check
          %p172 = pneg %p98
        $region26: #{tpu_custom_call.1} parent=15 // pred_check_branch
          %174 = sbr.rel (%p172) target = $region28
        $region27: #{tpu_custom_call.1} parent=15 // pred_region
          %p175 = scmp.lt.s32.totalorder %s19, 1
          %s176 = scalar_select %p175, %s19, 1
          %s177 = scalar_lea.vmem %s2, %s176
        $region28: #{tpu_custom_call.1} parent=15 // pred_fallthru
          _
      $region16: #{tpu_custom_call.1} parent=5 // pred_fallthru
        _
      %p178 = scmp.le.s32.totalorder 1, %s12
      %p179 = scmp.lt.s32.totalorder %s12, 3
      %p180 = pnand %p178, %p179
      %p181 = pneg %p180
      // Predicated region
      $region29: #{tpu_custom_call.1} parent=5 // pred_check
        _
      $region30: #{tpu_custom_call.1} parent=5 // pred_check_branch
        %183 = sbr.rel (%p180) target = $region32
      $region31: #{tpu_custom_call.1} parent=5 // pred_region
        %s184 = ssub.s32 %s12, 1
        %s185 = smul.u32 32, %s22
        %p186 = scmp.lt.s32.totalorder %s21, 1
        %s187 = scalar_select %p186, %s21, 1
        %p188 = scmp.lt.s32.totalorder %s185, 31
        %s189 = scalar_select %p188, %s185, 31
        %s190 = smul.addr %s187, 32
        %s191 = sadd.s32 %s189, %s190
        %s192 = smul.addr %s191, 4
        %s193 = scalar_lea.vmem %s0, %s192
        %p194 = pneg %p52
        %p195 = pneg %p49
        %p196 = scmp.lt.s32.totalorder %s21, 1
        %s197 = scalar_select %p196, %s21, 1
        %s198 = smul.addr %s197, 4
        %s199 = smul.addr %s198, 4
        %s200 = scalar_lea.vmem %s1, %s199
        %p201 = pneg %p78
        %p202 = pneg %p75
        %p203 = scmp.lt.s32.totalorder %s21, 1
        %s204 = scalar_select %p203, %s21, 1
        %s205 = scalar_lea.vmem %s2, %s204
        %p206 = pneg %p104
        %p207 = pneg %p101
        %p208 = pneg %p132
        %p209 = pneg %p129
        %s210 = sand.u32 %s119, 1
        %s211 = scalar_lea.sflag [#allocation3], %s210
        %s212 = sand.u32 %s119, 1
        %s213 = smul.addr %s212, 128
        %s214 = scalar_lea.vmem [#allocation2], %s213
        %s215 = smul.u32 32, %s22
        %p216 = scmp.lt.s32.totalorder %s21, 1
        %s217 = scalar_select %p216, %s21, 1
        %p218 = scmp.lt.s32.totalorder %s215, 31
        %s219 = scalar_select %p218, %s215, 31
        %s220 = smul.addr %s217, 32
        %s221 = sadd.s32 %s219, %s220
        %s222 = smul.addr %s221, 4
        %s223 = scalar_lea.vmem %s0, %s222
        %s224 = smul.u32 32, %s22
        %p225 = scmp.lt.s32.totalorder %s21, 1
        %s226 = scalar_select %p225, %s21, 1
        %s227 = smul.addr %s226, 4
        %s228 = smul.addr %s227, 4
        %s229 = scalar_lea.vmem %s1, %s228
        %p230 = scmp.lt.s32.totalorder %s21, 1
        %s231 = scalar_select %p230, %s21, 1
        %s232 = scalar_lea.vmem %s2, %s231
        %s233 = smul.u32 32, %s22
        %v235 = vld [vmem:[%s223] sm:$0xf]
        %v236 = vld [vmem:[%s223 + $0x4] sm:$0xf]
        %v237 = vld [vmem:[%s223 + $0x8] sm:$0xf]
        %v238 = vld [vmem:[%s223 + $0xc] sm:$0xf]
        %v239 = vld [vmem:[%s223 + $0x10] sm:$0xf]
        %v240 = vld [vmem:[%s223 + $0x14] sm:$0xf]
        %v241 = vld [vmem:[%s223 + $0x18] sm:$0xf]
        %v242 = vld [vmem:[%s223 + $0x1c] sm:$0xf]
        %v243 = vld [vmem:[%s223 + $0x20] sm:$0xf]
        %v244 = vld [vmem:[%s223 + $0x24] sm:$0xf]
        %v245 = vld [vmem:[%s223 + $0x28] sm:$0xf]
        %v246 = vld [vmem:[%s223 + $0x2c] sm:$0xf]
        %v247 = vld [vmem:[%s223 + $0x30] sm:$0xf]
        %v248 = vld [vmem:[%s223 + $0x34] sm:$0xf]
        %v249 = vld [vmem:[%s223 + $0x38] sm:$0xf]
        %v250 = vld [vmem:[%s223 + $0x3c] sm:$0xf]
        %v251 = vld [vmem:[%s223 + $0x40] sm:$0xf]
        %v252 = vld [vmem:[%s223 + $0x44] sm:$0xf]
        %v253 = vld [vmem:[%s223 + $0x48] sm:$0xf]
        %v254 = vld [vmem:[%s223 + $0x4c] sm:$0xf]
        %v255 = vld [vmem:[%s223 + $0x50] sm:$0xf]
        %v256 = vld [vmem:[%s223 + $0x54] sm:$0xf]
        %v257 = vld [vmem:[%s223 + $0x58] sm:$0xf]
        %v258 = vld [vmem:[%s223 + $0x5c] sm:$0xf]
        %v259 = vld [vmem:[%s223 + $0x60] sm:$0xf]
        %v260 = vld [vmem:[%s223 + $0x64] sm:$0xf]
        %v261 = vld [vmem:[%s223 + $0x68] sm:$0xf]
        %v262 = vld [vmem:[%s223 + $0x6c] sm:$0xf]
        %v263 = vld [vmem:[%s223 + $0x70] sm:$0xf]
        %v264 = vld [vmem:[%s223 + $0x74] sm:$0xf]
        %v265 = vld [vmem:[%s223 + $0x78] sm:$0xf]
        %v266 = vld [vmem:[%s223 + $0x7c] sm:$0xf]
        %v267 = vld [vmem:[%s229] sm:$0xf]
        %v268 = vld [vmem:[%s229 + $0x4] sm:$0xf]
        %v269 = vld [vmem:[%s229 + $0x8] sm:$0xf]
        %v270 = vld [vmem:[%s229 + $0xc] sm:$0xf]
        %v271 = vld [vmem:[%s232] sm:$0x1]
        %v273 = vperm.slane %v271, 0
        %v307 = vunpack.c.l.b16 %v235
        %v308 = vunpack.c.l.b16 %v236
        %v309 = vunpack.c.l.b16 %v237
        %v310 = vunpack.c.l.b16 %v238
        %v311 = vunpack.c.l.b16 %v239
        %v312 = vunpack.c.l.b16 %v240
        %v313 = vunpack.c.l.b16 %v241
        %v314 = vunpack.c.l.b16 %v242
        %v315 = vunpack.c.l.b16 %v243
        %v316 = vunpack.c.l.b16 %v244
        %v317 = vunpack.c.l.b16 %v245
        %v318 = vunpack.c.l.b16 %v246
        %v319 = vunpack.c.l.b16 %v247
        %v320 = vunpack.c.l.b16 %v248
        %v321 = vunpack.c.l.b16 %v249
        %v322 = vunpack.c.l.b16 %v250
        %v323 = vunpack.c.l.b16 %v251
        %v324 = vunpack.c.l.b16 %v252
        %v325 = vunpack.c.l.b16 %v253
        %v326 = vunpack.c.l.b16 %v254
        %v327 = vunpack.c.l.b16 %v255
        %v328 = vunpack.c.l.b16 %v256
        %v329 = vunpack.c.l.b16 %v257
        %v330 = vunpack.c.l.b16 %v258
        %v331 = vunpack.c.l.b16 %v259
        %v332 = vunpack.c.l.b16 %v260
        %v333 = vunpack.c.l.b16 %v261
        %v334 = vunpack.c.l.b16 %v262
        %v335 = vunpack.c.l.b16 %v263
        %v336 = vunpack.c.l.b16 %v264
        %v337 = vunpack.c.l.b16 %v265
        %v338 = vunpack.c.l.b16 %v266
        %v339 = vpack.c.b16 %v308, %v307
        %v340 = vpack.c.b16 %v310, %v309
        %v341 = vpack.c.b16 %v312, %v311
        %v342 = vpack.c.b16 %v314, %v313
        %v343 = vpack.c.b16 %v316, %v315
        %v344 = vpack.c.b16 %v318, %v317
        %v345 = vpack.c.b16 %v320, %v319
        %v346 = vpack.c.b16 %v322, %v321
        %v347 = vpack.c.b16 %v324, %v323
        %v348 = vpack.c.b16 %v326, %v325
        %v349 = vpack.c.b16 %v328, %v327
        %v350 = vpack.c.b16 %v330, %v329
        %v351 = vpack.c.b16 %v332, %v331
        %v352 = vpack.c.b16 %v334, %v333
        %v353 = vpack.c.b16 %v336, %v335
        %v354 = vpack.c.b16 %v338, %v337
        %v359 = vunpack.c.l.b16 %v267
        %v360 = vunpack.c.l.b16 %v268
        %v361 = vunpack.c.l.b16 %v269
        %v362 = vunpack.c.l.b16 %v270
        %v363 = vpack.c.b16 %v360, %v359
        %v364 = vpack.c.b16 %v362, %v361
        %vm367 = vcmask 261120
        %v369 = vsel %vm367, %v339, 0
        %v372 = vsel %vm367, %v340, 0
        %v375 = vsel %vm367, %v341, 0
        %v378 = vsel %vm367, %v342, 0
        %v381 = vsel %vm367, %v343, 0
        %v384 = vsel %vm367, %v344, 0
        %v387 = vsel %vm367, %v345, 0
        %v390 = vsel %vm367, %v346, 0
        %v393 = vsel %vm367, %v347, 0
        %v396 = vsel %vm367, %v348, 0
        %v399 = vsel %vm367, %v349, 0
        %v402 = vsel %vm367, %v350, 0
        %v405 = vsel %vm367, %v351, 0
        %v408 = vsel %vm367, %v352, 0
        %v411 = vsel %vm367, %v353, 0
        %v414 = vsel %vm367, %v354, 0
        %416 = vmatpush.bf16.msra.mxu0 0
        %417 = vmatpush.bf16.msra.mxu0 0
        %418 = vmatpush.bf16.msra.mxu0 0
        %419 = vmatpush.bf16.msra.mxu0 0
        %420 = vmatpush.bf16.msra.mxu0 0
        %421 = vmatpush.bf16.msra.mxu0 0
        %422 = vmatpush.bf16.msra.mxu0 %v364
        %423 = vmatpush.bf16.msra.mxu0 %v363
        %424 = vmatmul.bf16.gmra.mxu0 %v369
        %v425 = vpop.f32.mrf.mxu0
        %v426 = vadd.f32 %v273, %v425
        %v427 = vpop.f32.mrf.mxu0
        %v428 = vadd.f32 %v273, %v427
        %429 = vmatmul.bf16.gmra.mxu0 %v372
        %v430 = vpop.f32.mrf.mxu0
        %v431 = vadd.f32 %v273, %v430
        %v432 = vpop.f32.mrf.mxu0
        %v433 = vadd.f32 %v273, %v432
        %434 = vmatmul.bf16.gmra.mxu0 %v375
        %v435 = vpop.f32.mrf.mxu0
        %v436 = vadd.f32 %v273, %v435
        %v437 = vpop.f32.mrf.mxu0
        %v438 = vadd.f32 %v273, %v437
        %439 = vmatmul.bf16.gmra.mxu0 %v378
        %v440 = vpop.f32.mrf.mxu0
        %v441 = vadd.f32 %v273, %v440
        %v442 = vpop.f32.mrf.mxu0
        %v443 = vadd.f32 %v273, %v442
        %444 = vmatmul.bf16.gmra.mxu0 %v381
        %v445 = vpop.f32.mrf.mxu0
        %v446 = vadd.f32 %v273, %v445
        %v447 = vpop.f32.mrf.mxu0
        %v448 = vadd.f32 %v273, %v447
        %449 = vmatmul.bf16.gmra.mxu0 %v384
        %v450 = vpop.f32.mrf.mxu0
        %v451 = vadd.f32 %v273, %v450
        %v452 = vpop.f32.mrf.mxu0
        %v453 = vadd.f32 %v273, %v452
        %454 = vmatmul.bf16.gmra.mxu0 %v387
        %v455 = vpop.f32.mrf.mxu0
        %v456 = vadd.f32 %v273, %v455
        %v457 = vpop.f32.mrf.mxu0
        %v458 = vadd.f32 %v273, %v457
        %459 = vmatmul.bf16.gmra.mxu0 %v390
        %v460 = vpop.f32.mrf.mxu0
        %v461 = vadd.f32 %v273, %v460
        %v462 = vpop.f32.mrf.mxu0
        %v463 = vadd.f32 %v273, %v462
        %464 = vmatmul.bf16.gmra.mxu0 %v393
        %v465 = vpop.f32.mrf.mxu0
        %v466 = vadd.f32 %v273, %v465
        %v467 = vpop.f32.mrf.mxu0
        %v468 = vadd.f32 %v273, %v467
        %469 = vmatmul.bf16.gmra.mxu0 %v396
        %v470 = vpop.f32.mrf.mxu0
        %v471 = vadd.f32 %v273, %v470
        %v472 = vpop.f32.mrf.mxu0
        %v473 = vadd.f32 %v273, %v472
        %474 = vmatmul.bf16.gmra.mxu0 %v399
        %v475 = vpop.f32.mrf.mxu0
        %v476 = vadd.f32 %v273, %v475
        %v477 = vpop.f32.mrf.mxu0
        %v478 = vadd.f32 %v273, %v477
        %479 = vmatmul.bf16.gmra.mxu0 %v402
        %v480 = vpop.f32.mrf.mxu0
        %v481 = vadd.f32 %v273, %v480
        %v482 = vpop.f32.mrf.mxu0
        %v483 = vadd.f32 %v273, %v482
        %484 = vmatmul.bf16.gmra.mxu0 %v405
        %v485 = vpop.f32.mrf.mxu0
        %v486 = vadd.f32 %v273, %v485
        %v487 = vpop.f32.mrf.mxu0
        %v488 = vadd.f32 %v273, %v487
        %489 = vmatmul.bf16.gmra.mxu0 %v408
        %v490 = vpop.f32.mrf.mxu0
        %v491 = vadd.f32 %v273, %v490
        %v492 = vpop.f32.mrf.mxu0
        %v493 = vadd.f32 %v273, %v492
        %494 = vmatmul.bf16.gmra.mxu0 %v411
        %v495 = vpop.f32.mrf.mxu0
        %v496 = vadd.f32 %v273, %v495
        %v497 = vpop.f32.mrf.mxu0
        %v498 = vadd.f32 %v273, %v497
        %499 = vmatmul.bf16.gmra.mxu0 %v414
        %v500 = vpop.f32.mrf.mxu0
        %v501 = vadd.f32 %v273, %v500
        %v502 = vpop.f32.mrf.mxu0
        %v503 = vadd.f32 %v273, %v502
        %504 = vdwg.mxu0
        %v505 = vpack.c.bf16 %v426, %v426
        %v506 = vpack.c.bf16 %v428, %v428
        %v507 = vpack.c.bf16 %v431, %v431
        %v508 = vpack.c.bf16 %v433, %v433
        %v509 = vpack.c.bf16 %v436, %v436
        %v510 = vpack.c.bf16 %v438, %v438
        %v511 = vpack.c.bf16 %v441, %v441
        %v512 = vpack.c.bf16 %v443, %v443
        %v513 = vpack.c.bf16 %v446, %v446
        %v514 = vpack.c.bf16 %v448, %v448
        %v515 = vpack.c.bf16 %v451, %v451
        %v516 = vpack.c.bf16 %v453, %v453
        %v517 = vpack.c.bf16 %v456, %v456
        %v518 = vpack.c.bf16 %v458, %v458
        %v519 = vpack.c.bf16 %v461, %v461
        %v520 = vpack.c.bf16 %v463, %v463
        %v521 = vpack.c.bf16 %v466, %v466
        %v522 = vpack.c.bf16 %v468, %v468
        %v523 = vpack.c.bf16 %v471, %v471
        %v524 = vpack.c.bf16 %v473, %v473
        %v525 = vpack.c.bf16 %v476, %v476
        %v526 = vpack.c.bf16 %v478, %v478
        %v527 = vpack.c.bf16 %v481, %v481
        %v528 = vpack.c.bf16 %v483, %v483
        %v529 = vpack.c.bf16 %v486, %v486
        %v530 = vpack.c.bf16 %v488, %v488
        %v531 = vpack.c.bf16 %v491, %v491
        %v532 = vpack.c.bf16 %v493, %v493
        %v533 = vpack.c.bf16 %v496, %v496
        %v534 = vpack.c.bf16 %v498, %v498
        %v535 = vpack.c.bf16 %v501, %v501
        %v536 = vpack.c.bf16 %v503, %v503
        %537 = vst [vmem:[%s214] sm:$0xf] %v505
        %538 = vst [vmem:[%s214 + $0x4] sm:$0xf] %v506
        %539 = vst [vmem:[%s214 + $0x8] sm:$0xf] %v507
        %540 = vst [vmem:[%s214 + $0xc] sm:$0xf] %v508
        %541 = vst [vmem:[%s214 + $0x10] sm:$0xf] %v509
        %542 = vst [vmem:[%s214 + $0x14] sm:$0xf] %v510
        %543 = vst [vmem:[%s214 + $0x18] sm:$0xf] %v511
        %544 = vst [vmem:[%s214 + $0x1c] sm:$0xf] %v512
        %545 = vst [vmem:[%s214 + $0x20] sm:$0xf] %v513
        %546 = vst [vmem:[%s214 + $0x24] sm:$0xf] %v514
        %547 = vst [vmem:[%s214 + $0x28] sm:$0xf] %v515
        %548 = vst [vmem:[%s214 + $0x2c] sm:$0xf] %v516
        %549 = vst [vmem:[%s214 + $0x30] sm:$0xf] %v517
        %550 = vst [vmem:[%s214 + $0x34] sm:$0xf] %v518
        %551 = vst [vmem:[%s214 + $0x38] sm:$0xf] %v519
        %552 = vst [vmem:[%s214 + $0x3c] sm:$0xf] %v520
        %553 = vst [vmem:[%s214 + $0x40] sm:$0xf] %v521
        %554 = vst [vmem:[%s214 + $0x44] sm:$0xf] %v522
        %555 = vst [vmem:[%s214 + $0x48] sm:$0xf] %v523
        %556 = vst [vmem:[%s214 + $0x4c] sm:$0xf] %v524
        %557 = vst [vmem:[%s214 + $0x50] sm:$0xf] %v525
        %558 = vst [vmem:[%s214 + $0x54] sm:$0xf] %v526
        %559 = vst [vmem:[%s214 + $0x58] sm:$0xf] %v527
        %560 = vst [vmem:[%s214 + $0x5c] sm:$0xf] %v528
        %561 = vst [vmem:[%s214 + $0x60] sm:$0xf] %v529
        %562 = vst [vmem:[%s214 + $0x64] sm:$0xf] %v530
        %563 = vst [vmem:[%s214 + $0x68] sm:$0xf] %v531
        %564 = vst [vmem:[%s214 + $0x6c] sm:$0xf] %v532
        %565 = vst [vmem:[%s214 + $0x70] sm:$0xf] %v533
        %566 = vst [vmem:[%s214 + $0x74] sm:$0xf] %v534
        %567 = vst [vmem:[%s214 + $0x78] sm:$0xf] %v535
        %568 = vst [vmem:[%s214 + $0x7c] sm:$0xf] %v536
        %s569 = sand.u32 %s119, 1
        %s570 = scalar_lea.sflag [#allocation3], %s569
        %s571 = sand.u32 %s119, 1
        %s572 = smul.addr %s571, 128
        %s573 = scalar_lea.vmem [#allocation2], %s572
        // Predicated region
        $region33: #{tpu_custom_call.1} parent=31 // pred_check
          %p574 = pneg %p129
        $region34: #{tpu_custom_call.1} parent=31 // pred_check_branch
          %576 = sbr.rel (%p574) target = $region36
        $region35: #{tpu_custom_call.1} parent=31 // pred_region
          %s577 = smul.u32 32, %s22
          %579 = vsyncadd %s570, 0
          %s580 = smul.addr %s21, 32
          %s581 = sadd.s32 %s577, %s580
          %s582 = smul.addr %s581, 4
          %s583 = scalar_lea.hbm %s3, %s582
          %s584 = sshll.u32 %s573, 4
          %s585 = int_to_ptr.vmem [resolvable:$true] %s584
          %s586 = sshll.u32 %s583, 4
          %s587 = int_to_ptr.hbm [resolvable:$true] %s586
          %592 = dma.vmem_to_hbm [thread:$0]  %s585, 2048, %s587, %s570, 64, 64, 4
        $region36: #{tpu_custom_call.1} parent=31 // pred_fallthru
          _
      $region32: #{tpu_custom_call.1} parent=5 // pred_fallthru
        _
      %p593 = scmp.le.s32.totalorder 2, %s12
      // Predicated region
      $region37: #{tpu_custom_call.1} parent=5 // pred_check
        %p594 = pneg %p593
      $region38: #{tpu_custom_call.1} parent=5 // pred_check_branch
        %596 = sbr.rel (%p594) target = $region40
      $region39: #{tpu_custom_call.1} parent=5 // pred_region
        %s597 = ssub.s32 %s12, 2
        // Predicated region
        $region41: #{tpu_custom_call.1} parent=39 // pred_check
          %p598 = pneg %p135
        $region42: #{tpu_custom_call.1} parent=39 // pred_check_branch
          %600 = sbr.rel (%p598) target = $region44
        $region43: #{tpu_custom_call.1} parent=39 // pred_region
          %s601 = sand.u32 %s120, 1
          %s602 = scalar_lea.sflag [#allocation3], %s601
          %s603 = sand.u32 %s120, 1
          %s604 = smul.addr %s603, 128
          %s605 = scalar_lea.vmem [#allocation2], %s604
          %607 = dma.done %s602, 2048
        $region44: #{tpu_custom_call.1} parent=39 // pred_fallthru
          _
      $region40: #{tpu_custom_call.1} parent=5 // pred_fallthru
        _
    $region6: #{tpu_custom_call.1} parent=1 // loop_footer
      %s16 = sadd.s32 1, %s12
    $region7: #{tpu_custom_call.1} parent=1 // loop_footer_branch
      %11 = sbr.rel target = $region3
    $region8: #{tpu_custom_call.1} parent=1 // loop_exit
      _
    %608 = vsyncpa [#allocation3], 1
    %s609 = scalar_lea.sflag [#allocation3], 1
    %610 = vsyncpa %s609, 1

</llo_original>
